<compile_context>
chip_gen: v5e
topology: v5e:2x2
jax: 0.10.0
libtpu: 0.0.40
codegen_flags: <defaults>
</compile_context>

<pallas_src>
import functools

import numpy as np

import jax
import jax.numpy as jnp
from jax.experimental import pallas as pl
from jax.experimental.pallas import tpu as pltpu


def _conv_silu_kernel(x_ref, w_ref, b_ref, m_ref, o_ref, xx_ref, xcol_ref, *,
                      H, W, KH, KW, Cin, Cout):
    """One grid step = one image (NCHW-native, flattened spatial in lanes).

    x_ref    : (1, Cin, H*W)        input block (lane dim = H*W, dense)
    w_ref    : (Cout, KH*KW*Cin)    flattened conv weights
    b_ref    : (Cout, 1)            bias
    m_ref    : (KH*KW, H*W)         per-tap 0/1 border-validity masks
    o_ref    : (1, Cout, H*W)       output block (lane dim = H*W, dense)
    xx_ref   : (Cin, 2*H*W)         f32 scratch: image doubled along lanes
    xcol_ref : (KH*KW*Cin, H*W)     f32 scratch: transposed im2col matrix
    """
    HW = H * W
    ph, pw = KH // 2, KW // 2

    # Doubled copy of the image so every spatial shift is a static window.
    x = x_ref[0].astype(jnp.float32)              # (Cin, HW)
    xx_ref[:, 0:HW] = x
    xx_ref[:, HW:2 * HW] = x

    # im2col (transposed): row block t*Cin:(t+1)*Cin holds tap t of all
    # channels; border taps are zeroed via the precomputed masks.
    for kh in range(KH):
        for kw in range(KW):
            t = kh * KW + kw
            s = (kh - ph) * W + (kw - pw)         # flat spatial shift
            start = s % HW                        # static, in [0, HW)
            shifted = xx_ref[:, start:start + HW]     # (Cin, HW)
            if s != 0:
                shifted = shifted * m_ref[t:t + 1, :]  # zero out-of-image taps
            xcol_ref[t * Cin:(t + 1) * Cin, :] = shifted

    # Single fused MXU contraction (K = KH*KW*Cin) + bias + SiLU, all in f32.
    acc = jnp.dot(w_ref[...].astype(jnp.float32), xcol_ref[...],
                  preferred_element_type=jnp.float32)      # (Cout, HW)
    acc = acc + b_ref[...].astype(jnp.float32)             # (Cout,1) broadcast
    acc = acc * jax.nn.sigmoid(acc)                        # SiLU

    # One dense, lane-aligned store.
    o_ref[0] = acc.astype(o_ref.dtype)


def conv_wrapper_forward(x_nchw, weight, bias):
    """ConvWrapper forward.

    Args:
      x_nchw: (N, Cin, H, W)   PyTorch NCHW input.
      weight: (Cout, Cin, KH, KW)
      bias:   (Cout,)
    Returns:
      (N, Cout, H, W)  with stride=1 and 'same' (k//2) padding, SiLU applied.
    """
    N, Cin, H, W = x_nchw.shape
    Cout, Cin_w, KH, KW = weight.shape
    assert Cin_w == Cin, "groups != 1 is not supported"
    assert KH % 2 == 1 and KW % 2 == 1, "only odd kernel sizes supported"
    HW = H * W
    K = KH * KW * Cin
    ph, pw = KH // 2, KW // 2

    # Free reshapes / tiny weight relayout (no activation transposes).
    x_flat = x_nchw.reshape(N, Cin, HW)                            # bitcast
    w2 = jnp.transpose(weight, (0, 2, 3, 1)).reshape(Cout, K)      # (kh,kw,ci)
    b2 = bias.reshape(Cout, 1)

    # Compile-time 0/1 border masks per tap (host-side numpy constants).
    hh, ww = np.meshgrid(np.arange(H), np.arange(W), indexing="ij")
    masks_np = np.zeros((KH * KW, HW), np.float32)
    for kh in range(KH):
        for kw in range(KW):
            dh, dw = kh - ph, kw - pw
            valid = ((hh + dh >= 0) & (hh + dh < H) &
                     (ww + dw >= 0) & (ww + dw < W))
            masks_np[kh * KW + kw] = valid.reshape(-1).astype(np.float32)
    masks = jnp.asarray(masks_np)

    kernel = functools.partial(_conv_silu_kernel, H=H, W=W, KH=KH, KW=KW,
                               Cin=Cin, Cout=Cout)

    out_flat = pl.pallas_call(
        kernel,
        out_shape=jax.ShapeDtypeStruct((N, Cout, HW), x_nchw.dtype),
        grid_spec=pltpu.PrefetchScalarGridSpec(
            num_scalar_prefetch=0,
            grid=(N,),
            in_specs=[
                pl.BlockSpec((1, Cin, HW), lambda n: (n, 0, 0)),
                pl.BlockSpec((Cout, K), lambda n: (0, 0)),
                pl.BlockSpec((Cout, 1), lambda n: (0, 0)),
                pl.BlockSpec((KH * KW, HW), lambda n: (0, 0)),
            ],
            out_specs=pl.BlockSpec((1, Cout, HW), lambda n: (n, 0, 0)),
            scratch_shapes=[
                pltpu.VMEM((Cin, 2 * HW), jnp.float32),
                pltpu.VMEM((K, HW), jnp.float32),
            ],
        ),
        compiler_params=pltpu.CompilerParams(
            dimension_semantics=("parallel",),
        ),
    )(x_flat, w2, b2, masks)

    # (N, Cout, H*W) -> (N, Cout, H, W): contiguous, free.
    return out_flat.reshape(N, Cout, H, W)


def _reference(x_nchw, weight, bias):
    """Pure-JAX reference (lax conv) for correctness checking."""
    y = jax.lax.conv_general_dilated(
        x_nchw.astype(jnp.float32), weight.astype(jnp.float32),
        window_strides=(1, 1), padding="SAME",
        dimension_numbers=("NCHW", "OIHW", "NCHW"))
    y = y + bias.astype(jnp.float32)[None, :, None, None]
    return y * jax.nn.sigmoid(y)


if __name__ == "__main__":
    key = jax.random.PRNGKey(0)
    k_x, k_w, k_b = jax.random.split(key, 3)

    # Small shapes consistent with the module: batch=2, in_ch=4, out_ch=8,
    # spatial 16x16, kernel_size=3, stride=1, groups=1, bias=True.
    N, Cin, Cout, H, W, Ksz = 2, 4, 8, 16, 16, 3

    x = jax.random.normal(k_x, (N, Cin, H, W), dtype=jnp.float32)
    weight = jax.random.normal(k_w, (Cout, Cin, Ksz, Ksz), dtype=jnp.float32) * 0.1
    bias = jax.random.normal(k_b, (Cout,), dtype=jnp.float32) * 0.1

    out = conv_wrapper_forward(x, weight, bias)
    out = jax.block_until_ready(out)

    ref = _reference(x, weight, bias)
    assert out.shape == (N, Cout, H, W)
    assert jnp.allclose(out, ref, atol=1e-4, rtol=1e-4), "mismatch vs reference"

    print("KERNEL_OK")
</pallas_src>

<mosaic_0001>
module attributes {stable_mosaic.version = 11 : i64} {
  func.func @_conv_silu_kernel(%arg0: i32, %arg1: memref<1x4x256xf32, #tpu.memory_space<vmem>>, %arg2: memref<8x36xf32, #tpu.memory_space<vmem>>, %arg3: memref<8x1xf32, #tpu.memory_space<vmem>>, %arg4: memref<9x256xf32, #tpu.memory_space<vmem>>, %arg5: memref<1x8x256xf32, #tpu.memory_space<vmem>>, %arg6: memref<4x512xf32, #tpu.memory_space<vmem>>, %arg7: memref<36x256xf32, #tpu.memory_space<vmem>>) attributes {dimension_semantics = [#tpu.dimension_semantics<parallel>], iteration_bounds = array<i64: 2>, scalar_prefetch = 0 : i64, scratch_operands = 2 : i64, tpu.core_type = #tpu.core_type<tc>, window_params = [{transform_indices = @transform_0, window_bounds = array<i64: 1, 4, 256>}, {pipeline_mode = #tpu.pipeline_mode<synchronous>, transform_indices = @transform_1, window_bounds = array<i64: 8, 36>}, {pipeline_mode = #tpu.pipeline_mode<synchronous>, transform_indices = @transform_2, window_bounds = array<i64: 8, 1>}, {pipeline_mode = #tpu.pipeline_mode<synchronous>, transform_indices = @transform_3, window_bounds = array<i64: 9, 256>}, {transform_indices = @transform_4, window_bounds = array<i64: 1, 8, 256>}]} {
    %c0 = arith.constant 0 : index
    %c0_0 = arith.constant 0 : index
    %c0_1 = arith.constant 0 : index
    %0 = vector.load %arg1[%c0, %c0_0, %c0_1] : memref<1x4x256xf32, #tpu.memory_space<vmem>>, vector<1x4x256xf32>
    %1 = vector.shape_cast %0 : vector<1x4x256xf32> to vector<4x256xf32>
    %c0_2 = arith.constant 0 : index
    %c0_3 = arith.constant 0 : index
    %2 = vector.load %arg6[%c0_2, %c0_3] : memref<4x512xf32, #tpu.memory_space<vmem>>, vector<4x256xf32>
    tpu.vector_store %arg6[%c0_2, %c0_3], %1 {strides = array<i32>} : memref<4x512xf32, #tpu.memory_space<vmem>>, vector<4x256xf32>,
    %c0_4 = arith.constant 0 : index
    %c256 = arith.constant 256 : index
    %3 = vector.load %arg6[%c0_4, %c256] : memref<4x512xf32, #tpu.memory_space<vmem>>, vector<4x256xf32>
    tpu.vector_store %arg6[%c0_4, %c256], %1 {strides = array<i32>} : memref<4x512xf32, #tpu.memory_space<vmem>>, vector<4x256xf32>,
    %c0_5 = arith.constant 0 : index
    %c239 = arith.constant 239 : index
    %4 = vector.load %arg6[%c0_5, %c239] : memref<4x512xf32, #tpu.memory_space<vmem>>, vector<4x256xf32>
    %c0_6 = arith.constant 0 : index
    %c0_7 = arith.constant 0 : index
    %5 = vector.load %arg4[%c0_6, %c0_7] : memref<9x256xf32, #tpu.memory_space<vmem>>, vector<1x256xf32>
    %6 = vector.broadcast %5 : vector<1x256xf32> to vector<4x256xf32>
    %7 = arith.mulf %4, %6 : vector<4x256xf32>
    %c0_8 = arith.constant 0 : index
    %c0_9 = arith.constant 0 : index
    %8 = vector.load %arg7[%c0_8, %c0_9] : memref<36x256xf32, #tpu.memory_space<vmem>>, vector<4x256xf32>
    tpu.vector_store %arg7[%c0_8, %c0_9], %7 {strides = array<i32>} : memref<36x256xf32, #tpu.memory_space<vmem>>, vector<4x256xf32>,
    %c0_10 = arith.constant 0 : index
    %c240 = arith.constant 240 : index
    %9 = vector.load %arg6[%c0_10, %c240] : memref<4x512xf32, #tpu.memory_space<vmem>>, vector<4x256xf32>
    %c1 = arith.constant 1 : index
    %c0_11 = arith.constant 0 : index
    %10 = vector.load %arg4[%c1, %c0_11] : memref<9x256xf32, #tpu.memory_space<vmem>>, vector<1x256xf32>
    %11 = vector.broadcast %10 : vector<1x256xf32> to vector<4x256xf32>
    %12 = arith.mulf %9, %11 : vector<4x256xf32>
    %c4 = arith.constant 4 : index
    %c0_12 = arith.constant 0 : index
    %13 = vector.load %arg7[%c4, %c0_12] : memref<36x256xf32, #tpu.memory_space<vmem>>, vector<4x256xf32>
    tpu.vector_store %arg7[%c4, %c0_12], %12 {strides = array<i32>} : memref<36x256xf32, #tpu.memory_space<vmem>>, vector<4x256xf32>,
    %c0_13 = arith.constant 0 : index
    %c241 = arith.constant 241 : index
    %14 = vector.load %arg6[%c0_13, %c241] : memref<4x512xf32, #tpu.memory_space<vmem>>, vector<4x256xf32>
    %c2 = arith.constant 2 : index
    %c0_14 = arith.constant 0 : index
    %15 = vector.load %arg4[%c2, %c0_14] : memref<9x256xf32, #tpu.memory_space<vmem>>, vector<1x256xf32>
    %16 = vector.broadcast %15 : vector<1x256xf32> to vector<4x256xf32>
    %17 = arith.mulf %14, %16 : vector<4x256xf32>
    %c8 = arith.constant 8 : index
    %c0_15 = arith.constant 0 : index
    %18 = vector.load %arg7[%c8, %c0_15] : memref<36x256xf32, #tpu.memory_space<vmem>>, vector<4x256xf32>
    tpu.vector_store %arg7[%c8, %c0_15], %17 {strides = array<i32>} : memref<36x256xf32, #tpu.memory_space<vmem>>, vector<4x256xf32>,
    %c0_16 = arith.constant 0 : index
    %c255 = arith.constant 255 : index
    %19 = vector.load %arg6[%c0_16, %c255] : memref<4x512xf32, #tpu.memory_space<vmem>>, vector<4x256xf32>
    %c3 = arith.constant 3 : index
    %c0_17 = arith.constant 0 : index
    %20 = vector.load %arg4[%c3, %c0_17] : memref<9x256xf32, #tpu.memory_space<vmem>>, vector<1x256xf32>
    %21 = vector.broadcast %20 : vector<1x256xf32> to vector<4x256xf32>
    %22 = arith.mulf %19, %21 : vector<4x256xf32>
    %c12 = arith.constant 12 : index
    %c0_18 = arith.constant 0 : index
    %23 = vector.load %arg7[%c12, %c0_18] : memref<36x256xf32, #tpu.memory_space<vmem>>, vector<4x256xf32>
    tpu.vector_store %arg7[%c12, %c0_18], %22 {strides = array<i32>} : memref<36x256xf32, #tpu.memory_space<vmem>>, vector<4x256xf32>,
    %c0_19 = arith.constant 0 : index
    %c0_20 = arith.constant 0 : index
    %24 = vector.load %arg6[%c0_19, %c0_20] : memref<4x512xf32, #tpu.memory_space<vmem>>, vector<4x256xf32>
    %c16 = arith.constant 16 : index
    %c0_21 = arith.constant 0 : index
    %25 = vector.load %arg7[%c16, %c0_21] : memref<36x256xf32, #tpu.memory_space<vmem>>, vector<4x256xf32>
    tpu.vector_store %arg7[%c16, %c0_21], %24 {strides = array<i32>} : memref<36x256xf32, #tpu.memory_space<vmem>>, vector<4x256xf32>,
    %c0_22 = arith.constant 0 : index
    %c1_23 = arith.constant 1 : index
    %26 = vector.load %arg6[%c0_22, %c1_23] : memref<4x512xf32, #tpu.memory_space<vmem>>, vector<4x256xf32>
    %c5 = arith.constant 5 : index
    %c0_24 = arith.constant 0 : index
    %27 = vector.load %arg4[%c5, %c0_24] : memref<9x256xf32, #tpu.memory_space<vmem>>, vector<1x256xf32>
    %28 = vector.broadcast %27 : vector<1x256xf32> to vector<4x256xf32>
    %29 = arith.mulf %26, %28 : vector<4x256xf32>
    %c20 = arith.constant 20 : index
    %c0_25 = arith.constant 0 : index
    %30 = vector.load %arg7[%c20, %c0_25] : memref<36x256xf32, #tpu.memory_space<vmem>>, vector<4x256xf32>
    tpu.vector_store %arg7[%c20, %c0_25], %29 {strides = array<i32>} : memref<36x256xf32, #tpu.memory_space<vmem>>, vector<4x256xf32>,
    %c0_26 = arith.constant 0 : index
    %c15 = arith.constant 15 : index
    %31 = vector.load %arg6[%c0_26, %c15] : memref<4x512xf32, #tpu.memory_space<vmem>>, vector<4x256xf32>
    %c6 = arith.constant 6 : index
    %c0_27 = arith.constant 0 : index
    %32 = vector.load %arg4[%c6, %c0_27] : memref<9x256xf32, #tpu.memory_space<vmem>>, vector<1x256xf32>
    %33 = vector.broadcast %32 : vector<1x256xf32> to vector<4x256xf32>
    %34 = arith.mulf %31, %33 : vector<4x256xf32>
    %c24 = arith.constant 24 : index
    %c0_28 = arith.constant 0 : index
    %35 = vector.load %arg7[%c24, %c0_28] : memref<36x256xf32, #tpu.memory_space<vmem>>, vector<4x256xf32>
    tpu.vector_store %arg7[%c24, %c0_28], %34 {strides = array<i32>} : memref<36x256xf32, #tpu.memory_space<vmem>>, vector<4x256xf32>,
    %c0_29 = arith.constant 0 : index
    %c16_30 = arith.constant 16 : index
    %36 = vector.load %arg6[%c0_29, %c16_30] : memref<4x512xf32, #tpu.memory_space<vmem>>, vector<4x256xf32>
    %c7 = arith.constant 7 : index
    %c0_31 = arith.constant 0 : index
    %37 = vector.load %arg4[%c7, %c0_31] : memref<9x256xf32, #tpu.memory_space<vmem>>, vector<1x256xf32>
    %38 = vector.broadcast %37 : vector<1x256xf32> to vector<4x256xf32>
    %39 = arith.mulf %36, %38 : vector<4x256xf32>
    %c28 = arith.constant 28 : index
    %c0_32 = arith.constant 0 : index
    %40 = vector.load %arg7[%c28, %c0_32] : memref<36x256xf32, #tpu.memory_space<vmem>>, vector<4x256xf32>
    tpu.vector_store %arg7[%c28, %c0_32], %39 {strides = array<i32>} : memref<36x256xf32, #tpu.memory_space<vmem>>, vector<4x256xf32>,
    %c0_33 = arith.constant 0 : index
    %c17 = arith.constant 17 : index
    %41 = vector.load %arg6[%c0_33, %c17] : memref<4x512xf32, #tpu.memory_space<vmem>>, vector<4x256xf32>
    %c8_34 = arith.constant 8 : index
    %c0_35 = arith.constant 0 : index
    %42 = vector.load %arg4[%c8_34, %c0_35] : memref<9x256xf32, #tpu.memory_space<vmem>>, vector<1x256xf32>
    %43 = vector.broadcast %42 : vector<1x256xf32> to vector<4x256xf32>
    %44 = arith.mulf %41, %43 : vector<4x256xf32>
    %c32 = arith.constant 32 : index
    %c0_36 = arith.constant 0 : index
    %45 = vector.load %arg7[%c32, %c0_36] : memref<36x256xf32, #tpu.memory_space<vmem>>, vector<4x256xf32>
    tpu.vector_store %arg7[%c32, %c0_36], %44 {strides = array<i32>} : memref<36x256xf32, #tpu.memory_space<vmem>>, vector<4x256xf32>,
    %c0_37 = arith.constant 0 : index
    %c0_38 = arith.constant 0 : index
    %46 = vector.load %arg2[%c0_37, %c0_38] : memref<8x36xf32, #tpu.memory_space<vmem>>, vector<8x36xf32>
    %c0_39 = arith.constant 0 : index
    %c0_40 = arith.constant 0 : index
    %47 = vector.load %arg7[%c0_39, %c0_40] : memref<36x256xf32, #tpu.memory_space<vmem>>, vector<36x256xf32>
    %cst = arith.constant dense<0.000000e+00> : vector<8x256xf32>
    %48 = tpu.matmul %46, %47, %cst {dimension_numbers = #tpu.dot_dimension_numbers<[1], [0], [0], [1], [0, 0, 1, 1], [], []>} : vector<8x36xf32>, vector<36x256xf32>, vector<8x256xf32> -> vector<8x256xf32>
    %c0_41 = arith.constant 0 : index
    %c0_42 = arith.constant 0 : index
    %49 = vector.load %arg3[%c0_41, %c0_42] : memref<8x1xf32, #tpu.memory_space<vmem>>, vector<8x1xf32>
    %50 = vector.broadcast %49 : vector<8x1xf32> to vector<8x256xf32>
    %51 = arith.addf %48, %50 : vector<8x256xf32>
    %52 = arith.negf %51 : vector<8x256xf32>
    %53 = math.exp %52 : vector<8x256xf32>
    %cst_43 = arith.constant 1.000000e+00 : f32
    %54 = vector.broadcast %cst_43 : f32 to vector<8x256xf32>
    %55 = arith.addf %54, %53 : vector<8x256xf32>
    %56 = arith.divf %54, %55 : vector<8x256xf32>
    %57 = arith.mulf %51, %56 : vector<8x256xf32>
    %c0_44 = arith.constant 0 : index
    %c0_45 = arith.constant 0 : index
    %c0_46 = arith.constant 0 : index
    %58 = vector.load %arg5[%c0_44, %c0_45, %c0_46] : memref<1x8x256xf32, #tpu.memory_space<vmem>>, vector<1x8x256xf32>
    %59 = vector.shape_cast %58 : vector<1x8x256xf32> to vector<8x256xf32>
    %60 = vector.shape_cast %57 : vector<8x256xf32> to vector<1x8x256xf32>
    tpu.vector_store %arg5[%c0_44, %c0_45, %c0_46], %60 {strides = array<i32>} : memref<1x8x256xf32, #tpu.memory_space<vmem>>, vector<1x8x256xf32>,
    return
  }
  func.func @transform_0(%arg0: i32) -> (i32, i32, i32) {
    %c0_i32 = arith.constant 0 : i32
    %c0_i32_0 = arith.constant 0 : i32
    %c0_i32_1 = arith.constant 0 : i32
    return %arg0, %c0_i32, %c0_i32_0 : i32, i32, i32
  }
  func.func @transform_1(%arg0: i32) -> (i32, i32) {
    %c0_i32 = arith.constant 0 : i32
    %c0_i32_0 = arith.constant 0 : i32
    %c0_i32_1 = arith.constant 0 : i32
    return %c0_i32, %c0_i32_0 : i32, i32
  }
  func.func @transform_2(%arg0: i32) -> (i32, i32) {
    %c0_i32 = arith.constant 0 : i32
    %c0_i32_0 = arith.constant 0 : i32
    %c0_i32_1 = arith.constant 0 : i32
    return %c0_i32, %c0_i32_0 : i32, i32
  }
  func.func @transform_3(%arg0: i32) -> (i32, i32) {
    %c0_i32 = arith.constant 0 : i32
    %c0_i32_0 = arith.constant 0 : i32
    %c0_i32_1 = arith.constant 0 : i32
    return %c0_i32, %c0_i32_0 : i32, i32
  }
  func.func @transform_4(%arg0: i32) -> (i32, i32, i32) {
    %c0_i32 = arith.constant 0 : i32
    %c0_i32_0 = arith.constant 0 : i32
    %c0_i32_1 = arith.constant 0 : i32
    return %arg0, %c0_i32, %c0_i32_0 : i32, i32, i32
  }
}

</mosaic_0001>

<llo_original>
// kernel: tpu_custom_call.1
$region0: #{tpu_custom_call.1}
  #allocation0 [shape = 'u32[]', space=smem, size = 0x4, offset = 0x4, fixed_abs, tag = 'smem constant byte address 0x4 - core index']
  #allocation1 [shape = 'u32[72,128]{1,0:T(1,128)}', space=vmem, size = 0x9000, scoped, tag = 'internal scratch']
  #allocation2 [shape = 'f32[4,512]{1,0:T(4,128)}', space=vmem, size = 0x2000, scoped, tag = 'scratch operand']
  #allocation3 [shape = 'f32[36,256]{1,0:T(8,128)}', space=vmem, size = 0xa000, scoped, tag = 'scratch operand']
  %s0 = inlined_call_operand.hbm [shape: f32[2,4,256], index: 0, kind: input, shape index: {}]
  %s1 = inlined_call_operand.vmem [shape: f32[8,36], index: 1, kind: input, shape index: {}]
  %s2 = inlined_call_operand.vmem [shape: f32[8,1], index: 2, kind: input, shape index: {}]
  %s3 = inlined_call_operand.hbm [shape: f32[9,256], index: 3, kind: input, shape index: {}]
  %s4 = inlined_call_operand.hbm [shape: f32[2,8,256], index: 4, kind: output, shape index: {}]
  %s5 = sld [smem:[#allocation0]]
  $region57: #{tpu_custom_call.1} parent=0
    _
  %s7 = ssub.s32 1, %s5
  %s8 = scalar_select 0, %s7, %s5
  $region1: #{tpu_custom_call.1} parent=0
    #allocation4 [shape = 'u8[8192]{0}', space=vmem, size = 0x2000, scoped, tag = 'input window, operand 0']
    #allocation5 [shape = 's32[2]{0}', space=sflag, size = 0x8, scoped, tag = 'scoped memory for tpu_custom_call.1']
    #allocation6 [shape = 's32[2]{0}', space=sflag, size = 0x8, scoped, tag = 'scoped memory for tpu_custom_call.1']
    #allocation7 [shape = 'u8[16384]{0}', space=vmem, size = 0x4000, scoped, tag = 'input window, operand 3, single buffered']
    #allocation8 [shape = 's32[1]{0}', space=sflag, size = 0x4, scoped, tag = 'scoped memory for tpu_custom_call.1']
    #allocation9 [shape = 'u8[16384]{0}', space=vmem, size = 0x4000, scoped, tag = 'output window, operand 0']
    %9 = vsyncpa [#allocation5], 0
    %s10 = scalar_lea.sflag [#allocation5], 1
    %11 = vsyncpa %s10, 0
    %12 = vsyncpa [#allocation8], 0
    %13 = vsyncpa [#allocation6], 0
    %s14 = scalar_lea.sflag [#allocation6], 1
    %15 = vsyncpa %s14, 0
    loop: start=0, step=1, limit=4
    $region2: #{tpu_custom_call.1} parent=1 // loop_pre_header
      _
    $region3: #{tpu_custom_call.1} parent=1 // loop_header
      %s17 = sphi 0, %s21
      %p18 = scmp.ge.s32.totalorder %s17, 4
      %s27 = sphi 0, %s29
      %s30 = sphi 0, %s27
      %s31 = sphi 0, %s30
      %s47 = sphi 0, %s31
      %s51 = sphi 0, %s51
      %s53 = sphi 0, %s51
      %s54 = sphi 0, %s53
      %s68 = sphi 0, %s54
      %s72 = sphi 0, %s72
      %s74 = sphi 0, %s72
      %s75 = sphi 0, %s74
      %s89 = sphi 0, %s75
      %s93 = sphi 0, %s93
      %s95 = sphi 0, %s93
      %s96 = sphi 0, %s95
      %s110 = sphi 0, %s96
      %s116 = sphi 0, %s118
      %s119 = sphi 0, %s116
      %s120 = sphi 0, %s119
      %s136 = sphi 0, %s120
    $region4: #{tpu_custom_call.1} parent=1 // loop_header_branch
      %20 = sbr.rel (%p18) target = $region8
    $region5: #{tpu_custom_call.1} parent=1 // loop_body
      %s22 = ssub.s32 %s17, 1
      %s23 = ssub.s32 %s17, 2
      %s24 = sadd.s32 %s17, 1
      %s25 = ssub.s32 %s17, %s24
      %p26 = scmp.eq.s32.totalorder %s25, 0
      %s28 = sadd.s32 %s27, 1
      %s29 = scalar_select %p26, %s27, %s28
      %p32 = pneg %p26
      %p33 = scmp.eq.s32.totalorder %s17, 1
      %p34 = por %p32, %p33
      %p35 = scmp.ne.s32.totalorder %s27, %s30
      %p36 = scmp.eq.s32.totalorder %s17, 0
      %p37 = por %p35, %p36
      %p38 = scmp.ne.s32.totalorder %s27, %s30
      %p39 = scmp.eq.s32.totalorder %s22, 1
      %p40 = por %p38, %p39
      %p41 = scmp.ne.s32.totalorder %s30, %s31
      %p42 = scmp.eq.s32.totalorder %s22, 0
      %p43 = por %p41, %p42
      %p44 = scmp.ne.s32.totalorder %s30, %s31
      %p45 = scmp.eq.s32.totalorder %s23, 1
      %p46 = por %p44, %p45
      %p48 = scmp.ne.s32.totalorder %s31, %s47
      %p49 = scmp.eq.s32.totalorder %s23, 0
      %p50 = por %p48, %p49
      %s52 = sadd.s32 %s51, 1
      %p55 = scmp.eq.s32.totalorder %s17, 1
      %p56 = scmp.ne.s32.totalorder %s51, %s53
      %p57 = scmp.eq.s32.totalorder %s17, 0
      %p58 = por %p56, %p57
      %p59 = scmp.ne.s32.totalorder %s51, %s53
      %p60 = scmp.eq.s32.totalorder %s22, 1
      %p61 = por %p59, %p60
      %p62 = scmp.ne.s32.totalorder %s53, %s54
      %p63 = scmp.eq.s32.totalorder %s22, 0
      %p64 = por %p62, %p63
      %p65 = scmp.ne.s32.totalorder %s53, %s54
      %p66 = scmp.eq.s32.totalorder %s23, 1
      %p67 = por %p65, %p66
      %p69 = scmp.ne.s32.totalorder %s54, %s68
      %p70 = scmp.eq.s32.totalorder %s23, 0
      %p71 = por %p69, %p70
      %s73 = sadd.s32 %s72, 1
      %p76 = scmp.eq.s32.totalorder %s17, 1
      %p77 = scmp.ne.s32.totalorder %s72, %s74
      %p78 = scmp.eq.s32.totalorder %s17, 0
      %p79 = por %p77, %p78
      %p80 = scmp.ne.s32.totalorder %s72, %s74
      %p81 = scmp.eq.s32.totalorder %s22, 1
      %p82 = por %p80, %p81
      %p83 = scmp.ne.s32.totalorder %s74, %s75
      %p84 = scmp.eq.s32.totalorder %s22, 0
      %p85 = por %p83, %p84
      %p86 = scmp.ne.s32.totalorder %s74, %s75
      %p87 = scmp.eq.s32.totalorder %s23, 1
      %p88 = por %p86, %p87
      %p90 = scmp.ne.s32.totalorder %s75, %s89
      %p91 = scmp.eq.s32.totalorder %s23, 0
      %p92 = por %p90, %p91
      %s94 = sadd.s32 %s93, 1
      %p97 = scmp.eq.s32.totalorder %s17, 1
      %p98 = scmp.ne.s32.totalorder %s93, %s95
      %p99 = scmp.eq.s32.totalorder %s17, 0
      %p100 = por %p98, %p99
      %p101 = scmp.ne.s32.totalorder %s93, %s95
      %p102 = scmp.eq.s32.totalorder %s22, 1
      %p103 = por %p101, %p102
      %p104 = scmp.ne.s32.totalorder %s95, %s96
      %p105 = scmp.eq.s32.totalorder %s22, 0
      %p106 = por %p104, %p105
      %p107 = scmp.ne.s32.totalorder %s95, %s96
      %p108 = scmp.eq.s32.totalorder %s23, 1
      %p109 = por %p107, %p108
      %p111 = scmp.ne.s32.totalorder %s96, %s110
      %p112 = scmp.eq.s32.totalorder %s23, 0
      %p113 = por %p111, %p112
      %s114 = ssub.s32 %s17, %s24
      %p115 = scmp.eq.s32.totalorder %s114, 0
      %s117 = sadd.s32 %s116, 1
      %s118 = scalar_select %p115, %s116, %s117
      %p121 = pneg %p115
      %p122 = scmp.eq.s32.totalorder %s17, 1
      %p123 = por %p121, %p122
      %p124 = scmp.ne.s32.totalorder %s116, %s119
      %p125 = scmp.eq.s32.totalorder %s17, 0
      %p126 = por %p124, %p125
      %p127 = scmp.ne.s32.totalorder %s116, %s119
      %p128 = scmp.eq.s32.totalorder %s22, 1
      %p129 = por %p127, %p128
      %p130 = scmp.ne.s32.totalorder %s119, %s120
      %p131 = scmp.eq.s32.totalorder %s22, 0
      %p132 = por %p130, %p131
      %p133 = scmp.ne.s32.totalorder %s119, %s120
      %p134 = scmp.eq.s32.totalorder %s23, 1
      %p135 = por %p133, %p134
      %p137 = scmp.ne.s32.totalorder %s120, %s136
      %p138 = scmp.eq.s32.totalorder %s23, 0
      %p139 = por %p137, %p138
      %p140 = scmp.le.s32.totalorder 1, %s17
      %p141 = scmp.lt.s32.totalorder %s17, 3
      %p142 = pnand %p140, %p141
      %p143 = pneg %p142
      // Predicated region
      $region9: #{tpu_custom_call.1} parent=5 // pred_check
        _
      $region10: #{tpu_custom_call.1} parent=5 // pred_check_branch
        %145 = sbr.rel (%p142) target = $region12
      $region11: #{tpu_custom_call.1} parent=5 // pred_region
        %s146 = ssub.s32 %s17, 1
        // Predicated region
        $region13: #{tpu_custom_call.1} parent=11 // pred_check
          %p147 = pneg %p64
        $region14: #{tpu_custom_call.1} parent=11 // pred_check_branch
          %149 = sbr.rel (%p147) target = $region16
        $region15: #{tpu_custom_call.1} parent=11 // pred_region
          _
        $region16: #{tpu_custom_call.1} parent=11 // pred_fallthru
          _
        // Predicated region
        $region17: #{tpu_custom_call.1} parent=11 // pred_check
          %p150 = pneg %p85
        $region18: #{tpu_custom_call.1} parent=11 // pred_check_branch
          %152 = sbr.rel (%p150) target = $region20
        $region19: #{tpu_custom_call.1} parent=11 // pred_region
          _
        $region20: #{tpu_custom_call.1} parent=11 // pred_fallthru
          _
        // Predicated region
        $region21: #{tpu_custom_call.1} parent=11 // pred_check
          %p153 = pneg %p106
        $region22: #{tpu_custom_call.1} parent=11 // pred_check_branch
          %155 = sbr.rel (%p153) target = $region24
        $region23: #{tpu_custom_call.1} parent=11 // pred_region
          %157 = vsyncadd [#allocation8], 0
          %s158 = sshll.u32 %s3, 4
          %s159 = int_to_ptr.hbm [resolvable:$true] %s158
          %s160 = sshll.u32 [#allocation7], 4
          %s161 = int_to_ptr.vmem [resolvable:$true] %s160
          %166 = dma.hbm_to_vmem [thread:$0]  %s159, 512, %s161, [#allocation8], 256, 256, 16
        $region24: #{tpu_custom_call.1} parent=11 // pred_fallthru
          _
      $region12: #{tpu_custom_call.1} parent=5 // pred_fallthru
        _
      %p167 = scmp.lt.s32.totalorder %s17, 2
      // Predicated region
      $region25: #{tpu_custom_call.1} parent=5 // pred_check
        %p168 = pneg %p167
      $region26: #{tpu_custom_call.1} parent=5 // pred_check_branch
        %170 = sbr.rel (%p168) target = $region28
      $region27: #{tpu_custom_call.1} parent=5 // pred_region
        // Predicated region
        $region29: #{tpu_custom_call.1} parent=27 // pred_check
          %p171 = pneg %p37
        $region30: #{tpu_custom_call.1} parent=27 // pred_check_branch
          %173 = sbr.rel (%p171) target = $region32
        $region31: #{tpu_custom_call.1} parent=27 // pred_region
          %s174 = sand.u32 %s27, 1
          %s175 = scalar_lea.sflag [#allocation5], %s174
          %s176 = sand.u32 %s27, 1
          %s177 = smul.addr %s176, 8
          %s178 = scalar_lea.vmem [#allocation4], %s177
          %180 = vsyncadd %s175, 0
          %s181 = smul.addr %s17, 2
          %s182 = smul.addr %s181, 4
          %s183 = scalar_lea.hbm %s0, %s182
          %s185 = sshll.u32 %s183, 4
          %s186 = int_to_ptr.hbm [resolvable:$true] %s185
          %s187 = sshll.u32 %s178, 4
          %s188 = int_to_ptr.vmem [resolvable:$true] %s187
          %190 = dma.hbm_to_vmem [thread:$0]  %s186, 128, %s188, %s175
        $region32: #{tpu_custom_call.1} parent=27 // pred_fallthru
          _
      $region28: #{tpu_custom_call.1} parent=5 // pred_fallthru
        _
      %p191 = scmp.le.s32.totalorder 1, %s17
      %p192 = scmp.lt.s32.totalorder %s17, 3
      %p193 = pnand %p191, %p192
      %p194 = pneg %p193
      // Predicated region
      $region33: #{tpu_custom_call.1} parent=5 // pred_check
        _
      $region34: #{tpu_custom_call.1} parent=5 // pred_check_branch
        %196 = sbr.rel (%p193) target = $region36
      $region35: #{tpu_custom_call.1} parent=5 // pred_region
        %s197 = ssub.s32 %s17, 1
        %s198 = sand.u32 %s30, 1
        %s199 = scalar_lea.sflag [#allocation5], %s198
        %s200 = sand.u32 %s30, 1
        %s201 = smul.addr %s200, 8
        %s202 = scalar_lea.vmem [#allocation4], %s201
        // Predicated region
        $region37: #{tpu_custom_call.1} parent=35 // pred_check
          %p203 = pneg %p43
        $region38: #{tpu_custom_call.1} parent=35 // pred_check_branch
          %205 = sbr.rel (%p203) target = $region40
        $region39: #{tpu_custom_call.1} parent=35 // pred_region
          %207 = dma.done %s199, 128
        $region40: #{tpu_custom_call.1} parent=35 // pred_fallthru
          _
        // Predicated region
        $region41: #{tpu_custom_call.1} parent=35 // pred_check
          %p208 = pneg %p106
        $region42: #{tpu_custom_call.1} parent=35 // pred_check_branch
          %210 = sbr.rel (%p208) target = $region44
        $region43: #{tpu_custom_call.1} parent=35 // pred_region
          %212 = dma.done [#allocation8], 512
        $region44: #{tpu_custom_call.1} parent=35 // pred_fallthru
          _
        %s213 = sand.u32 %s30, 1
        %s214 = scalar_lea.sflag [#allocation5], %s213
        %s215 = sand.u32 %s30, 1
        %s216 = smul.addr %s215, 8
        %s217 = scalar_lea.vmem [#allocation4], %s216
        %p218 = pneg %p43
        %p219 = pneg %p40
        %p220 = pneg %p64
        %p221 = pneg %p61
        %p222 = pneg %p85
        %p223 = pneg %p82
        %p224 = pneg %p106
        %p225 = pneg %p103
        %p226 = pneg %p132
        %p227 = pneg %p129
        %s228 = sand.u32 %s119, 1
        %s229 = scalar_lea.sflag [#allocation6], %s228
        %s230 = sand.u32 %s119, 1
        %s231 = smul.addr %s230, 16
        %s232 = scalar_lea.vmem [#allocation9], %s231
        %v233 = vld [vmem:[%s202] sm:$0xff]
        %234 = vst [vmem:[#allocation2] sm:$0xff] %v233
        %235 = vst [vmem:[#allocation2 + $0x8] sm:$0xff] %v233
        %v236 = vld [vmem:[#allocation2 + $0x4] sm:$0xff]
        %v237 = vld [vmem:[#allocation2 + $0xc] sm:$0xf]
        %v238 = vld [vmem:[#allocation7] ss:$8 sm:$0x3]
        %v240 = vperm.slane %v238, 0
        %v241 = vperm.slane %v238, 1
        %v242 = vrot.slane %v241, 4
        %vm243 = vcmask 1043456
        %v244 = vsel %vm243, %v240, %v242
        %245 = vrot.lane.b32.xlu0 %v244, 111
        %v246 = vpop.permute.xlu0 %245
        %v247 = vrot.slane %v246, 4
        %vm248 = vcmask 908288
        %v249 = vsel %vm248, %v247, %v246
        %v252 = vmul.f32 %v236, %v249
        %v253 = vmul.f32 %v237, %v247
        %256 = vst [vmem:[#allocation1] ss:$2 sm:$0xff] %v252
        %s257 = scalar_lea.vmem [#allocation1], 16
        %258 = vst [vmem:[%s257] ss:$2 sm:$0xff] %v253
        %v259 = vld.sshfl [vmem:[#allocation1] sm:$0xff pattern:$0x75316420]
        %v260 = vld.sshfl [vmem:[#allocation1 + $0x8] sm:$0xff pattern:$0x75316420]
        %v261 = vld.sshfl [vmem:[#allocation1 + $0x10] sm:$0xff pattern:$0x75316420]
        %262 = vrot.lane.b32.xlu0 %v259, 17
        %v263 = vpop.permute.xlu0 %262
        %264 = vrot.lane.b32.xlu0 %v260, 17
        %v265 = vpop.permute.xlu0 %264
        %266 = vrot.lane.b32.xlu0 %v261, 17
        %v267 = vpop.permute.xlu0 %266
        %vm268 = vcmask 138240
        %v269 = vsel %vm268, %v263, %v265
        %v270 = vsel %vm268, %v265, %v267
        %273 = vst [vmem:[#allocation3] sm:$0xf] %v269
        %274 = vst [vmem:[#allocation3 + $0x8] sm:$0xf] %v270
        %v275 = vld [vmem:[#allocation2 + $0x4] sm:$0xff]
        %v276 = vld [vmem:[#allocation2 + $0xc] sm:$0xf]
        %s277 = scalar_lea.vmem [#allocation7], 1
        %v278 = vld [vmem:[%s277] ss:$8 sm:$0x3]
        %v280 = vperm.slane %v278, 0
        %v281 = vperm.slane %v278, 1
        %v282 = vrot.slane %v281, 4
        %v283 = vsel %vm243, %v280, %v282
        %284 = vrot.lane.b32.xlu0 %v283, 112
        %v285 = vpop.permute.xlu0 %284
        %v286 = vrot.slane %v285, 4
        %vm287 = vcmask 916480
        %v288 = vsel %vm287, %v286, %v285
        %v291 = vmul.f32 %v275, %v288
        %v292 = vmul.f32 %v276, %v286
        %s295 = scalar_lea.vmem [#allocation1], 1
        %296 = vst [vmem:[%s295] ss:$2 sm:$0xff] %v291
        %s297 = scalar_lea.vmem [#allocation1], 17
        %298 = vst [vmem:[%s297] ss:$2 sm:$0xff] %v292
        %v299 = vld.sshfl [vmem:[#allocation1] sm:$0xff pattern:$0x75316420]
        %v300 = vld.sshfl [vmem:[#allocation1 + $0x8] sm:$0xff pattern:$0x75316420]
        %v301 = vld.sshfl [vmem:[#allocation1 + $0x10] sm:$0xff pattern:$0x75316420]
        %302 = vrot.lane.b32.xlu0 %v299, 16
        %v303 = vpop.permute.xlu0 %302
        %304 = vrot.lane.b32.xlu0 %v300, 16
        %v305 = vpop.permute.xlu0 %304
        %306 = vrot.lane.b32.xlu0 %v301, 16
        %v307 = vpop.permute.xlu0 %306
        %vm308 = vcmask 130048
        %v309 = vsel %vm308, %v303, %v305
        %v310 = vsel %vm308, %v305, %v307
        %313 = vst [vmem:[#allocation3] sm:$0xf0] %v309
        %314 = vst [vmem:[#allocation3 + $0x8] sm:$0xf0] %v310
        %v315 = vld [vmem:[#allocation2 + $0x4] sm:$0xff]
        %v316 = vld [vmem:[#allocation2 + $0xc] sm:$0xf]
        %s317 = scalar_lea.vmem [#allocation7], 2
        %v318 = vld [vmem:[%s317] ss:$8 sm:$0x3]
        %v320 = vperm.slane %v318, 0
        %v321 = vperm.slane %v318, 1
        %v322 = vrot.slane %v321, 4
        %v323 = vsel %vm243, %v320, %v322
        %324 = vrot.lane.b32.xlu0 %v323, 113
        %v325 = vpop.permute.xlu0 %324
        %v326 = vrot.slane %v325, 4
        %vm327 = vcmask 924672
        %v328 = vsel %vm327, %v326, %v325
        %v331 = vmul.f32 %v315, %v328
        %v332 = vmul.f32 %v316, %v326
        %335 = vst [vmem:[#allocation1] ss:$2 sm:$0xff] %v331
        %s336 = scalar_lea.vmem [#allocation1], 16
        %337 = vst [vmem:[%s336] ss:$2 sm:$0xff] %v332
        %v338 = vld.sshfl [vmem:[#allocation1] sm:$0xff pattern:$0x75316420]
        %v339 = vld.sshfl [vmem:[#allocation1 + $0x8] sm:$0xff pattern:$0x75316420]
        %v340 = vld.sshfl [vmem:[#allocation1 + $0x10] sm:$0xff pattern:$0x75316420]
        %341 = vrot.lane.b32.xlu0 %v338, 15
        %v342 = vpop.permute.xlu0 %341
        %343 = vrot.lane.b32.xlu0 %v339, 15
        %v344 = vpop.permute.xlu0 %343
        %345 = vrot.lane.b32.xlu0 %v340, 15
        %v346 = vpop.permute.xlu0 %345
        %vm347 = vcmask 121856
        %v348 = vsel %vm347, %v342, %v344
        %v349 = vsel %vm347, %v344, %v346
        %352 = vst [vmem:[#allocation3 + $0x10] sm:$0xf] %v348
        %353 = vst [vmem:[#allocation3 + $0x18] sm:$0xf] %v349
        %v354 = vld [vmem:[#allocation2 + $0x4] sm:$0xff]
        %v355 = vld [vmem:[#allocation2 + $0xc] sm:$0xf]
        %s356 = scalar_lea.vmem [#allocation7], 3
        %v357 = vld [vmem:[%s356] ss:$8 sm:$0x3]
        %v359 = vperm.slane %v357, 0
        %v360 = vperm.slane %v357, 1
        %v361 = vrot.slane %v360, 4
        %v362 = vsel %vm243, %v359, %v361
        %363 = vrot.lane.b32.xlu0 %v362, 127
        %v364 = vpop.permute.xlu0 %363
        %v365 = vrot.slane %v364, 4
        %vm366 = vcmask 1039360
        %v367 = vsel %vm366, %v365, %v364
        %v370 = vmul.f32 %v354, %v367
        %v371 = vmul.f32 %v355, %v365
        %s374 = scalar_lea.vmem [#allocation1], 1
        %375 = vst [vmem:[%s374] ss:$2 sm:$0xff] %v370
        %s376 = scalar_lea.vmem [#allocation1], 17
        %377 = vst [vmem:[%s376] ss:$2 sm:$0xff] %v371
        %v378 = vld.sshfl [vmem:[#allocation1] sm:$0xff pattern:$0x75316420]
        %v379 = vld.sshfl [vmem:[#allocation1 + $0x8] sm:$0xff pattern:$0x75316420]
        %v380 = vld.sshfl [vmem:[#allocation1 + $0x10] sm:$0xff pattern:$0x75316420]
        %381 = vrot.lane.b32.xlu0 %v378, 1
        %v382 = vpop.permute.xlu0 %381
        %383 = vrot.lane.b32.xlu0 %v379, 1
        %v384 = vpop.permute.xlu0 %383
        %385 = vrot.lane.b32.xlu0 %v380, 1
        %v386 = vpop.permute.xlu0 %385
        %vm387 = vcmask 7168
        %v388 = vsel %vm387, %v382, %v384
        %v389 = vsel %vm387, %v384, %v386
        %392 = vst [vmem:[#allocation3 + $0x10] sm:$0xf0] %v388
        %393 = vst [vmem:[#allocation3 + $0x18] sm:$0xf0] %v389
        %v394 = vld [vmem:[#allocation2] sm:$0xff]
        %396 = vst [vmem:[#allocation1] ss:$2 sm:$0xff] %v394
        %v397 = vld.sshfl [vmem:[#allocation1] sm:$0xff pattern:$0x75316420]
        %v398 = vld.sshfl [vmem:[#allocation1 + $0x8] sm:$0xff pattern:$0x75316420]
        %401 = vst [vmem:[#allocation3 + $0x20] sm:$0xf] %v397
        %402 = vst [vmem:[#allocation3 + $0x28] sm:$0xf] %v398
        %v403 = vld [vmem:[#allocation2] sm:$0xff]
        %v404 = vld [vmem:[#allocation2 + $0x8] sm:$0xf]
        %s405 = scalar_lea.vmem [#allocation7], 5
        %v406 = vld [vmem:[%s405] ss:$8 sm:$0x3]
        %v408 = vperm.slane %v406, 0
        %v409 = vperm.slane %v406, 1
        %v410 = vrot.slane %v409, 4
        %v411 = vsel %vm243, %v408, %v410
        %412 = vrot.lane.b32.xlu0 %v411, 1
        %v413 = vpop.permute.xlu0 %412
        %v414 = vrot.slane %v413, 4
        %v415 = vsel %vm387, %v414, %v413
        %v418 = vmul.f32 %v403, %v415
        %v419 = vmul.f32 %v404, %v414
        %s422 = scalar_lea.vmem [#allocation1], 1
        %423 = vst [vmem:[%s422] ss:$2 sm:$0xff] %v418
        %s424 = scalar_lea.vmem [#allocation1], 17
        %425 = vst [vmem:[%s424] ss:$2 sm:$0xff] %v419
        %v426 = vld.sshfl [vmem:[#allocation1] sm:$0xff pattern:$0x75316420]
        %v427 = vld.sshfl [vmem:[#allocation1 + $0x8] sm:$0xff pattern:$0x75316420]
        %v428 = vld.sshfl [vmem:[#allocation1 + $0x10] sm:$0xff pattern:$0x75316420]
        %429 = vrot.lane.b32.xlu0 %v426, 127
        %v430 = vpop.permute.xlu0 %429
        %431 = vrot.lane.b32.xlu0 %v427, 127
        %v432 = vpop.permute.xlu0 %431
        %433 = vrot.lane.b32.xlu0 %v428, 127
        %v434 = vpop.permute.xlu0 %433
        %v435 = vsel %vm366, %v430, %v432
        %v436 = vsel %vm366, %v432, %v434
        %439 = vst [vmem:[#allocation3 + $0x20] sm:$0xf0] %v435
        %440 = vst [vmem:[#allocation3 + $0x28] sm:$0xf0] %v436
        %v441 = vld [vmem:[#allocation2] sm:$0xff]
        %v442 = vld [vmem:[#allocation2 + $0x8] sm:$0xf]
        %s443 = scalar_lea.vmem [#allocation7], 6
        %v444 = vld [vmem:[%s443] ss:$8 sm:$0x3]
        %v446 = vperm.slane %v444, 0
        %v447 = vperm.slane %v444, 1
        %v448 = vrot.slane %v447, 4
        %v449 = vsel %vm243, %v446, %v448
        %450 = vrot.lane.b32.xlu0 %v449, 15
        %v451 = vpop.permute.xlu0 %450
        %v452 = vrot.slane %v451, 4
        %v453 = vsel %vm347, %v452, %v451
        %v456 = vmul.f32 %v441, %v453
        %v457 = vmul.f32 %v442, %v452
        %460 = vst [vmem:[#allocation1] ss:$2 sm:$0xff] %v456
        %s461 = scalar_lea.vmem [#allocation1], 16
        %462 = vst [vmem:[%s461] ss:$2 sm:$0xff] %v457
        %v463 = vld.sshfl [vmem:[#allocation1] sm:$0xff pattern:$0x75316420]
        %v464 = vld.sshfl [vmem:[#allocation1 + $0x8] sm:$0xff pattern:$0x75316420]
        %v465 = vld.sshfl [vmem:[#allocation1 + $0x10] sm:$0xff pattern:$0x75316420]
        %466 = vrot.lane.b32.xlu0 %v463, 113
        %v467 = vpop.permute.xlu0 %466
        %468 = vrot.lane.b32.xlu0 %v464, 113
        %v469 = vpop.permute.xlu0 %468
        %470 = vrot.lane.b32.xlu0 %v465, 113
        %v471 = vpop.permute.xlu0 %470
        %v472 = vsel %vm327, %v467, %v469
        %v473 = vsel %vm327, %v469, %v471
        %476 = vst [vmem:[#allocation3 + $0x30] sm:$0xf] %v472
        %477 = vst [vmem:[#allocation3 + $0x38] sm:$0xf] %v473
        %v478 = vld [vmem:[#allocation2] sm:$0xff]
        %v479 = vld [vmem:[#allocation2 + $0x8] sm:$0xf]
        %s480 = scalar_lea.vmem [#allocation7], 7
        %v481 = vld [vmem:[%s480] ss:$8 sm:$0x3]
        %v483 = vperm.slane %v481, 0
        %v484 = vperm.slane %v481, 1
        %v485 = vrot.slane %v484, 4
        %v486 = vsel %vm243, %v483, %v485
        %487 = vrot.lane.b32.xlu0 %v486, 16
        %v488 = vpop.permute.xlu0 %487
        %v489 = vrot.slane %v488, 4
        %v490 = vsel %vm308, %v489, %v488
        %v493 = vmul.f32 %v478, %v490
        %v494 = vmul.f32 %v479, %v489
        %s497 = scalar_lea.vmem [#allocation1], 1
        %498 = vst [vmem:[%s497] ss:$2 sm:$0xff] %v493
        %s499 = scalar_lea.vmem [#allocation1], 17
        %500 = vst [vmem:[%s499] ss:$2 sm:$0xff] %v494
        %v501 = vld.sshfl [vmem:[#allocation1] sm:$0xff pattern:$0x75316420]
        %v502 = vld.sshfl [vmem:[#allocation1 + $0x8] sm:$0xff pattern:$0x75316420]
        %v503 = vld.sshfl [vmem:[#allocation1 + $0x10] sm:$0xff pattern:$0x75316420]
        %504 = vrot.lane.b32.xlu0 %v501, 112
        %v505 = vpop.permute.xlu0 %504
        %506 = vrot.lane.b32.xlu0 %v502, 112
        %v507 = vpop.permute.xlu0 %506
        %508 = vrot.lane.b32.xlu0 %v503, 112
        %v509 = vpop.permute.xlu0 %508
        %v510 = vsel %vm287, %v505, %v507
        %v511 = vsel %vm287, %v507, %v509
        %514 = vst [vmem:[#allocation3 + $0x30] sm:$0xf0] %v510
        %515 = vst [vmem:[#allocation3 + $0x38] sm:$0xf0] %v511
        %v516 = vld [vmem:[#allocation2] sm:$0xff]
        %v517 = vld [vmem:[#allocation2 + $0x8] sm:$0xf]
        %s518 = scalar_lea.vmem [#allocation7], 16
        %v519 = vld [vmem:[%s518] ss:$8 sm:$0x3]
        %v521 = vperm.slane %v519, 0
        %v522 = vperm.slane %v519, 1
        %v523 = vrot.slane %v522, 4
        %v524 = vsel %vm243, %v521, %v523
        %525 = vrot.lane.b32.xlu0 %v524, 17
        %v526 = vpop.permute.xlu0 %525
        %v527 = vrot.slane %v526, 4
        %v528 = vsel %vm268, %v527, %v526
        %v531 = vmul.f32 %v516, %v528
        %v532 = vmul.f32 %v517, %v527
        %535 = vst [vmem:[#allocation1] ss:$2 sm:$0xff] %v531
        %s536 = scalar_lea.vmem [#allocation1], 16
        %537 = vst [vmem:[%s536] ss:$2 sm:$0xff] %v532
        %v538 = vld.sshfl [vmem:[#allocation1] sm:$0xff pattern:$0x75316420]
        %v539 = vld.sshfl [vmem:[#allocation1 + $0x8] sm:$0xff pattern:$0x75316420]
        %v540 = vld.sshfl [vmem:[#allocation1 + $0x10] sm:$0xff pattern:$0x75316420]
        %541 = vrot.lane.b32.xlu0 %v538, 111
        %v542 = vpop.permute.xlu0 %541
        %543 = vrot.lane.b32.xlu0 %v539, 111
        %v544 = vpop.permute.xlu0 %543
        %545 = vrot.lane.b32.xlu0 %v540, 111
        %v546 = vpop.permute.xlu0 %545
        %v547 = vsel %vm248, %v542, %v544
        %v548 = vsel %vm248, %v544, %v546
        %551 = vst [vmem:[#allocation3 + $0x40] sm:$0xf] %v547
        %552 = vst [vmem:[#allocation3 + $0x48] sm:$0xf] %v548
        %v553 = vld [vmem:[%s1] sm:$0xff]
        %v554 = vld [vmem:[#allocation3] sm:$0xff]
        %v555 = vld [vmem:[#allocation3 + $0x8] sm:$0xff]
        %v556 = vld [vmem:[#allocation3 + $0x10] sm:$0xff]
        %v557 = vld [vmem:[#allocation3 + $0x18] sm:$0xff]
        %v558 = vld [vmem:[#allocation3 + $0x20] sm:$0xff]
        %v559 = vld [vmem:[#allocation3 + $0x28] sm:$0xff]
        %v560 = vld [vmem:[#allocation3 + $0x30] sm:$0xff]
        %v561 = vld [vmem:[#allocation3 + $0x38] sm:$0xff]
        %v562 = vld [vmem:[#allocation3 + $0x40] sm:$0xf]
        %v563 = vld [vmem:[#allocation3 + $0x48] sm:$0xf]
        %v564 = vld [vmem:[%s2] sm:$0xff]
        %566 = vset.pattern.permute.xlu0 0
        %567 = vperm.xlu0 %566, %v564
        %v568 = vpop.permute.xlu0 %567
        %vm570 = vcmask 293888
        %v572 = vsel %vm570, %v553, 0
        %v575 = vsel %vm243, %v562, 0
        %v578 = vsel %vm243, %v563, 0
        %580 = vmatpush.msra.mxu0 0.0
        %581 = vmatpush.msra.mxu0 0.0
        %582 = vmatpush.msra.mxu0 0.0
        %583 = vmatpush.msra.mxu0 0.0
        %584 = vmatpush.msra.mxu0 0.0
        %585 = vmatpush.msra.mxu0 0.0
        %586 = vmatpush.msra.mxu0 0.0
        %587 = vmatpush.msra.mxu0 0.0
        %588 = vmatpush.msra.mxu0 0.0
        %589 = vmatpush.msra.mxu0 0.0
        %590 = vmatpush.msra.mxu0 0.0
        %591 = vmatpush.msra.mxu0 %v575
        %592 = vmatpush.msra.mxu0 %v560
        %593 = vmatpush.msra.mxu0 %v558
        %594 = vmatpush.msra.mxu0 %v556
        %595 = vmatpush.msra.mxu0 %v554
        %596 = vmatmul.f32.gmra.mxu0 %v572
        %v597 = vpop.f32.mrf.mxu0
        %v598 = vadd.f32 %v568, %v597
        %599 = vdwg.mxu0
        %600 = vmatpush.msra.mxu0 0.0
        %601 = vmatpush.msra.mxu0 0.0
        %602 = vmatpush.msra.mxu0 0.0
        %603 = vmatpush.msra.mxu0 0.0
        %604 = vmatpush.msra.mxu0 0.0
        %605 = vmatpush.msra.mxu0 0.0
        %606 = vmatpush.msra.mxu0 0.0
        %607 = vmatpush.msra.mxu0 0.0
        %608 = vmatpush.msra.mxu0 0.0
        %609 = vmatpush.msra.mxu0 0.0
        %610 = vmatpush.msra.mxu0 0.0
        %611 = vmatpush.msra.mxu0 %v578
        %612 = vmatpush.msra.mxu0 %v561
        %613 = vmatpush.msra.mxu0 %v559
        %614 = vmatpush.msra.mxu0 %v557
        %615 = vmatpush.msra.mxu0 %v555
        %616 = vmatmul.f32.gmra.mxu0 %v572
        %v617 = vpop.f32.mrf.mxu0
        %v618 = vadd.f32 %v568, %v617
        %619 = vdwg.mxu0
        %v620 = vxor.u32 %v598, 2147483648
        %v621 = vxor.u32 %v618, 2147483648
        %v622 = vmul.f32 %v620, 1.442695
        %v623 = vpow.pop %v622
        %v624 = vmul.f32 %v621, 1.442695
        %v625 = vpow.pop %v624
        %v626 = vadd.f32 %v623, 1.0
        %v627 = vadd.f32 %v625, 1.0
        %v628 = vrcp.pop %v626
        %v629 = vmul.f32 %v626, %v628
        %v630 = vsub.f32 1.0, %v629
        %v631 = vmul.f32 %v628, %v630
        %v632 = vadd.f32 %v628, %v631
        %vm633 = vweird.f32 %v626
        %vm634 = vweird.f32 %v628
        %vm635 = vmor %vm633, %vm634
        %v636 = vsel %vm635, %v628, %v632
        %v637 = vand.u32 2147483647, %v626
        %vm638 = vcmp.eq.f32.partialorder %v637, 8.507059e+37
        %v639 = vand.u32 %v626, 2147483648
        %v640 = vor.u32 1.1754944e-38, %v639
        %v641 = vsel %vm638, %v640, %v636
        %v642 = vmul.f32 1.0, %v641
        %v643 = vrcp.pop %v627
        %v644 = vmul.f32 %v627, %v643
        %v645 = vsub.f32 1.0, %v644
        %v646 = vmul.f32 %v643, %v645
        %v647 = vadd.f32 %v643, %v646
        %vm648 = vweird.f32 %v627
        %vm649 = vweird.f32 %v643
        %vm650 = vmor %vm648, %vm649
        %v651 = vsel %vm650, %v643, %v647
        %v652 = vand.u32 2147483647, %v627
        %vm653 = vcmp.eq.f32.partialorder %v652, 8.507059e+37
        %v654 = vand.u32 %v627, 2147483648
        %v655 = vor.u32 1.1754944e-38, %v654
        %v656 = vsel %vm653, %v655, %v651
        %v657 = vmul.f32 1.0, %v656
        %v658 = vmul.f32 %v598, %v642
        %v659 = vmul.f32 %v618, %v657
        %660 = vst [vmem:[%s232] sm:$0xff] %v658
        %661 = vst [vmem:[%s232 + $0x8] sm:$0xff] %v659
        %s662 = sand.u32 %s119, 1
        %s663 = scalar_lea.sflag [#allocation6], %s662
        %s664 = sand.u32 %s119, 1
        %s665 = smul.addr %s664, 16
        %s666 = scalar_lea.vmem [#allocation9], %s665
        // Predicated region
        $region45: #{tpu_custom_call.1} parent=35 // pred_check
          %p667 = pneg %p129
        $region46: #{tpu_custom_call.1} parent=35 // pred_check_branch
          %669 = sbr.rel (%p667) target = $region48
        $region47: #{tpu_custom_call.1} parent=35 // pred_region
          %671 = vsyncadd %s663, 0
          %s672 = smul.addr %s22, 2
          %s673 = smul.addr %s672, 8
          %s674 = scalar_lea.hbm %s4, %s673
          %s676 = sshll.u32 %s666, 4
          %s677 = int_to_ptr.vmem [resolvable:$true] %s676
          %s678 = sshll.u32 %s674, 4
          %s679 = int_to_ptr.hbm [resolvable:$true] %s678
          %681 = dma.vmem_to_hbm [thread:$0]  %s677, 256, %s679, %s663
        $region48: #{tpu_custom_call.1} parent=35 // pred_fallthru
          _
      $region36: #{tpu_custom_call.1} parent=5 // pred_fallthru
        _
      %p682 = scmp.le.s32.totalorder 2, %s17
      // Predicated region
      $region49: #{tpu_custom_call.1} parent=5 // pred_check
        %p683 = pneg %p682
      $region50: #{tpu_custom_call.1} parent=5 // pred_check_branch
        %685 = sbr.rel (%p683) target = $region52
      $region51: #{tpu_custom_call.1} parent=5 // pred_region
        %s686 = ssub.s32 %s17, 2
        // Predicated region
        $region53: #{tpu_custom_call.1} parent=51 // pred_check
          %p687 = pneg %p135
        $region54: #{tpu_custom_call.1} parent=51 // pred_check_branch
          %689 = sbr.rel (%p687) target = $region56
        $region55: #{tpu_custom_call.1} parent=51 // pred_region
          %s690 = sand.u32 %s120, 1
          %s691 = scalar_lea.sflag [#allocation6], %s690
          %s692 = sand.u32 %s120, 1
          %s693 = smul.addr %s692, 16
          %s694 = scalar_lea.vmem [#allocation9], %s693
          %696 = dma.done %s691, 256
        $region56: #{tpu_custom_call.1} parent=51 // pred_fallthru
          _
      $region52: #{tpu_custom_call.1} parent=5 // pred_fallthru
        _
    $region6: #{tpu_custom_call.1} parent=1 // loop_footer
      %s21 = sadd.s32 1, %s17
    $region7: #{tpu_custom_call.1} parent=1 // loop_footer_branch
      %16 = sbr.rel target = $region3
    $region8: #{tpu_custom_call.1} parent=1 // loop_exit
      _
    %697 = vsyncpa [#allocation5], 1
    %s698 = scalar_lea.sflag [#allocation5], 1
    %699 = vsyncpa %s698, 1
    %700 = vsyncpa [#allocation8], 1
    %701 = vsyncpa [#allocation6], 1
    %s702 = scalar_lea.sflag [#allocation6], 1
    %703 = vsyncpa %s702, 1

</llo_original>
